<compile_context>
chip_gen: v6e
topology: v6e:2x2x1
jax: 0.10.0
libtpu: 0.0.40
codegen_flags: <defaults>
</compile_context>

<pallas_src>
import functools

import jax
import jax.numpy as jnp
from jax import lax
from jax.experimental import pallas as pl
from jax.experimental.pallas import tpu as pltpu


def _lstm_kernel(xp_ref, whh_ref, out_ref, h_sc, c_sc, *, hidden_size,
                 time_chunk):
    """One grid step = `time_chunk` LSTM timesteps for one N tile.

    xp_ref:  (T_c, TN, 4H) bf16 pre-computed input projections (time-major)
    whh_ref: (H, 4H)       bf16 hidden->gates weights (already transposed)
    out_ref: (TN, H)       f32 last-timestep hidden state (written on last chunk)
    h_sc, c_sc: (TN, H)    f32 recurrent state scratch (persist across chunks)
    """
    t_idx = pl.program_id(1)
    H = hidden_size

    @pl.when(t_idx == 0)
    def _init():
        h_sc[...] = jnp.zeros_like(h_sc)
        c_sc[...] = jnp.zeros_like(c_sc)

    whh = whh_ref[...]  # (H, 4H) bf16, hoisted load

    def step(t, carry):
        h, c = carry
        # gates: (TN, 4H) = x_proj_t + h_{t-1} @ W_hh^T (bias folded in already)
        # bf16 MXU operands, f32 accumulate; elementwise math stays f32.
        gates = xp_ref[t].astype(jnp.float32) + jnp.dot(
            h.astype(jnp.bfloat16), whh, preferred_element_type=jnp.float32)
        # Full-width transcendental passes, then cheap lane slices.
        sig_all = jax.nn.sigmoid(gates)
        tanh_all = jnp.tanh(gates)
        i_g = sig_all[:, 0 * H:1 * H]
        f_g = sig_all[:, 1 * H:2 * H]
        g_g = tanh_all[:, 2 * H:3 * H]
        o_g = sig_all[:, 3 * H:4 * H]
        c = f_g * c + i_g * g_g
        h = o_g * jnp.tanh(c)
        return h, c

    h, c = lax.fori_loop(0, time_chunk, step, (h_sc[...], c_sc[...]),
                         unroll=min(time_chunk, 8))
    h_sc[...] = h
    c_sc[...] = c

    @pl.when(t_idx == pl.num_programs(1) - 1)
    def _finalize():
        # Dropout is identity in eval mode; the fc(H -> 1) head runs in XLA.
        out_ref[...] = h.astype(out_ref.dtype)


def _round_up(x, m):
    return (x + m - 1) // m * m


def _vmem_capacity_bytes():
    """Per-core VMEM capacity; conservative (v7x per-TC) fallback."""
    try:
        info = pltpu.get_tpu_info()
        cap = int(getattr(info, "vmem_capacity_bytes"))
        if cap > 0:
            return cap
    except Exception:
        pass
    return 64 * 1024 * 1024


def _choose_n_tile(N):
    """Return (N_pad, TN).

    Small N: one 8-aligned tile (sublane requirement).
    Large N: pad to a multiple of 256 and tile by 256/512 (MXU M-dim aligned),
    guaranteeing >= 2 tiles so the 'parallel' axis can span both v7x cores.
    """
    if N <= 256:
        n_pad = _round_up(N, 8)
        return n_pad, n_pad
    n_pad = _round_up(N, 256)
    tn = 512 if n_pad % 512 == 0 else 256
    if n_pad // tn < 2:
        tn = max(tn // 2, 128)
    return n_pad, tn


def _pick_time_chunk(W, n_tile, four_h, budget_bytes):
    """Largest divisor of W whose double-buffered bf16 chunk fits the budget."""
    per_step = n_tile * four_h * 2  # bf16 bytes per timestep slab
    best = 1
    for tc in range(1, W + 1):
        if W % tc == 0 and 2 * tc * per_step <= budget_bytes:
            best = tc
    return best


def lstm_forward(x, params, *, window_size, num_features_original, hidden_size,
                 n_tile=None, time_chunk=None):
    """x: (B, M, num_features_augmented) -> (B, M) final scores."""
    B, M, F = x.shape
    D = num_features_original
    W = window_size
    H = hidden_size
    assert F == W * D, "num_features_augmented must equal window_size * num_features_original"
    N = B * M

    # Input Transformation: (B, M, F) -> (B*M, W, D)
    x_seq = x.reshape(N, W, D).astype(jnp.float32)

    if n_tile is not None:
        TN = n_tile
        N_pad = _round_up(N, TN)
    else:
        N_pad, TN = _choose_n_tile(N)
    assert N_pad % TN == 0 and TN % 8 == 0

    if N_pad != N:
        x_seq = jnp.pad(x_seq, ((0, N_pad - N), (0, 0), (0, 0)))

    w_ih = params["w_ih"].astype(jnp.float32)                      # (4H, D)
    w_hh_t = params["w_hh"].T.astype(jnp.bfloat16)                 # (H, 4H) bf16 MXU operand
    bias = (params["b_ih"] + params["b_hh"]).astype(jnp.float32)   # (4H,)

    # Hoisted input projection: one large lane-dense XLA matmul, bias folded in,
    # emitted directly time-major and stored bf16 (halves the dominant HBM stream).
    #   x_tm[t, n, :] = x_seq[n, t, :] @ W_ih^T + (b_ih + b_hh)
    x_tm = (jnp.einsum("nwd,gd->wng", x_seq, w_ih,
                       preferred_element_type=jnp.float32)
            + bias).astype(jnp.bfloat16)                           # (W, N_pad, 4H)

    # Generation-aware VMEM budgeting (v7x: 64 MiB per TC; v5e/v6e: 128 MiB).
    cap = _vmem_capacity_bytes()
    vmem_limit = min(cap // 2, 64 * 1024 * 1024)
    if time_chunk is not None:
        TC = time_chunk
    else:
        TC = _pick_time_chunk(W, TN, 4 * H, budget_bytes=vmem_limit // 2)
    assert W % TC == 0

    grid = (N_pad // TN, W // TC)

    kernel = functools.partial(_lstm_kernel, hidden_size=H, time_chunk=TC)

    h_last = pl.pallas_call(
        kernel,
        out_shape=jax.ShapeDtypeStruct((N_pad, H), jnp.float32),
        grid_spec=pltpu.PrefetchScalarGridSpec(
            num_scalar_prefetch=0,
            grid=grid,
            in_specs=[
                pl.BlockSpec((TC, TN, 4 * H), lambda n, t: (t, n, 0)),  # bf16 xp chunk
                pl.BlockSpec((H, 4 * H), lambda n, t: (0, 0)),          # bf16 W_hh^T
            ],
            out_specs=pl.BlockSpec((TN, H), lambda n, t: (n, 0)),
            scratch_shapes=[
                pltpu.VMEM((TN, H), jnp.float32),  # h
                pltpu.VMEM((TN, H), jnp.float32),  # c
            ],
        ),
        compiler_params=pltpu.CompilerParams(
            # N tiles are independent sequences (megacore-parallel);
            # the time axis is a sequential recurrence.
            dimension_semantics=("parallel", "arbitrary"),
            vmem_limit_bytes=vmem_limit,
        ),
    )(x_tm, w_hh_t)

    h_last = h_last[:N]                         # drop padded rows

    # Final Scores for Assets: fc(H -> 1) head done lane-dense in XLA.
    w_fc = params["w_fc"].astype(jnp.float32)   # (1, H)
    b_fc = params["b_fc"].astype(jnp.float32)   # (1,)
    scores = h_last @ w_fc.T + b_fc             # (N, 1)
    return scores.reshape(B, M)


def _reference_lstm(x, params, *, window_size, num_features_original, hidden_size):
    """Pure-JAX f32 reference for correctness check."""
    B, M, F = x.shape
    D, W, H = num_features_original, window_size, hidden_size
    N = B * M
    xs = x.reshape(N, W, D).astype(jnp.float32)
    h = jnp.zeros((N, H), jnp.float32)
    c = jnp.zeros((N, H), jnp.float32)
    bias = params["b_ih"] + params["b_hh"]
    for t in range(W):
        gates = xs[:, t, :] @ params["w_ih"].T + h @ params["w_hh"].T + bias
        i = jax.nn.sigmoid(gates[:, 0 * H:1 * H])
        f = jax.nn.sigmoid(gates[:, 1 * H:2 * H])
        g = jnp.tanh(gates[:, 2 * H:3 * H])
        o = jax.nn.sigmoid(gates[:, 3 * H:4 * H])
        c = f * c + i * g
        h = o * jnp.tanh(c)
    out = h @ params["w_fc"].T + params["b_fc"]
    return out.reshape(B, M)


if __name__ == "__main__":
    # Small shapes consistent with the module's forward.
    B = 2                      # batch_size
    M = 4                      # num_assets
    W = 8                      # window_size
    D = 4                      # num_features_original
    H = 32                     # HIDDEN_SIZE
    F = W * D                  # num_features_augmented

    key = jax.random.PRNGKey(0)
    k_x, k1, k2, k3, k4, k5, k6 = jax.random.split(key, 7)

    x = jax.random.normal(k_x, (B, M, F), dtype=jnp.float32)

    # Deterministic synthetic parameters (PyTorch-style U(-1/sqrt(H), 1/sqrt(H))).
    s = 1.0 / jnp.sqrt(jnp.float32(H))
    params = {
        "w_ih": jax.random.uniform(k1, (4 * H, D), jnp.float32, -s, s),
        "w_hh": jax.random.uniform(k2, (4 * H, H), jnp.float32, -s, s),
        "b_ih": jax.random.uniform(k3, (4 * H,), jnp.float32, -s, s),
        "b_hh": jax.random.uniform(k4, (4 * H,), jnp.float32, -s, s),
        "w_fc": jax.random.uniform(k5, (1, H), jnp.float32, -s, s),
        "b_fc": jax.random.uniform(k6, (1,), jnp.float32, -s, s),
    }

    scores = lstm_forward(x, params, window_size=W,
                          num_features_original=D, hidden_size=H)
    scores = jax.block_until_ready(scores)

    ref = _reference_lstm(x, params, window_size=W,
                          num_features_original=D, hidden_size=H)
    assert scores.shape == (B, M)
    # Tolerance loosened vs the pure-f32 version because the pre-activation
    # stream and the recurrent matmul operands are bf16 now.
    assert jnp.allclose(scores, ref, atol=3e-2, rtol=3e-2), "mismatch vs reference"

    print("KERNEL_OK")
</pallas_src>

<mosaic_0001>
module attributes {stable_mosaic.version = 11 : i64} {
  func.func @_lstm_kernel(%arg0: i32, %arg1: i32, %arg2: memref<8x8x128xbf16, #tpu.memory_space<vmem>>, %arg3: memref<32x128xbf16, #tpu.memory_space<vmem>>, %arg4: memref<8x32xf32, #tpu.memory_space<vmem>>, %arg5: memref<8x32xf32, #tpu.memory_space<vmem>>, %arg6: memref<8x32xf32, #tpu.memory_space<vmem>>) attributes {dimension_semantics = [#tpu.dimension_semantics<parallel>, #tpu.dimension_semantics<arbitrary>], iteration_bounds = array<i64: 1, 1>, scalar_prefetch = 0 : i64, scratch_operands = 2 : i64, tpu.core_type = #tpu.core_type<tc>, window_params = [{transform_indices = @transform_0, window_bounds = array<i64: 8, 8, 128>}, {pipeline_mode = #tpu.pipeline_mode<synchronous>, transform_indices = @transform_1, window_bounds = array<i64: 32, 128>}, {transform_indices = @transform_2, window_bounds = array<i64: 8, 32>}]} {
    %c0_i32 = arith.constant 0 : i32
    %0 = arith.cmpi eq, %arg1, %c0_i32 : i32
    %1 = arith.extui %0 : i1 to i32
    %c0_i32_0 = arith.constant 0 : i32
    %2 = arith.cmpi ne, %1, %c0_i32_0 : i32
    scf.if %2 {
      %cst_44 = arith.constant 0.000000e+00 : f32
      %187 = vector.broadcast %cst_44 : f32 to vector<8x32xf32>
      %c0_45 = arith.constant 0 : index
      %c0_46 = arith.constant 0 : index
      %188 = vector.load %arg5[%c0_45, %c0_46] : memref<8x32xf32, #tpu.memory_space<vmem>>, vector<8x32xf32>
      tpu.vector_store %arg5[%c0_45, %c0_46], %187 {strides = array<i32>} : memref<8x32xf32, #tpu.memory_space<vmem>>, vector<8x32xf32>,
      %cst_47 = arith.constant 0.000000e+00 : f32
      %189 = vector.broadcast %cst_47 : f32 to vector<8x32xf32>
      %c0_48 = arith.constant 0 : index
      %c0_49 = arith.constant 0 : index
      %190 = vector.load %arg6[%c0_48, %c0_49] : memref<8x32xf32, #tpu.memory_space<vmem>>, vector<8x32xf32>
      tpu.vector_store %arg6[%c0_48, %c0_49], %189 {strides = array<i32>} : memref<8x32xf32, #tpu.memory_space<vmem>>, vector<8x32xf32>,
    } else {
    }
    %c0 = arith.constant 0 : index
    %c0_1 = arith.constant 0 : index
    %3 = vector.load %arg3[%c0, %c0_1] : memref<32x128xbf16, #tpu.memory_space<vmem>>, vector<32x128xbf16>
    %c0_2 = arith.constant 0 : index
    %c0_3 = arith.constant 0 : index
    %4 = vector.load %arg5[%c0_2, %c0_3] : memref<8x32xf32, #tpu.memory_space<vmem>>, vector<8x32xf32>
    %c0_4 = arith.constant 0 : index
    %c0_5 = arith.constant 0 : index
    %5 = vector.load %arg6[%c0_4, %c0_5] : memref<8x32xf32, #tpu.memory_space<vmem>>, vector<8x32xf32>
    %c0_i32_6 = arith.constant 0 : i32
    %6 = arith.index_cast %c0_i32_6 : i32 to index
    %c0_7 = arith.constant 0 : index
    %c0_8 = arith.constant 0 : index
    %7 = vector.load %arg2[%6, %c0_7, %c0_8] : memref<8x8x128xbf16, #tpu.memory_space<vmem>>, vector<1x8x128xbf16>
    %8 = vector.shape_cast %7 : vector<1x8x128xbf16> to vector<8x128xbf16>
    %9 = arith.extf %8 : vector<8x128xbf16> to vector<8x128xf32>
    %10 = arith.truncf %4 : vector<8x32xf32> to vector<8x32xbf16>
    %cst = arith.constant dense<0.000000e+00> : vector<8x128xf32>
    %11 = tpu.matmul %10, %3, %cst {dimension_numbers = #tpu.dot_dimension_numbers<[1], [0], [0], [1], [0, 0, 1, 1], [], []>} : vector<8x32xbf16>, vector<32x128xbf16>, vector<8x128xf32> -> vector<8x128xf32>
    %12 = arith.addf %9, %11 : vector<8x128xf32>
    %13 = arith.negf %12 : vector<8x128xf32>
    %14 = math.exp %13 : vector<8x128xf32>
    %cst_9 = arith.constant 1.000000e+00 : f32
    %15 = vector.broadcast %cst_9 : f32 to vector<8x128xf32>
    %16 = arith.addf %15, %14 : vector<8x128xf32>
    %17 = arith.divf %15, %16 : vector<8x128xf32>
    %18 = math.tanh %12 : vector<8x128xf32>
    %19 = vector.extract_strided_slice %17 {offsets = [0, 0], sizes = [8, 32], strides = [1, 1]} : vector<8x128xf32> to vector<8x32xf32>
    %20 = vector.extract_strided_slice %17 {offsets = [0, 32], sizes = [8, 32], strides = [1, 1]} : vector<8x128xf32> to vector<8x32xf32>
    %21 = vector.extract_strided_slice %18 {offsets = [0, 64], sizes = [8, 32], strides = [1, 1]} : vector<8x128xf32> to vector<8x32xf32>
    %22 = vector.extract_strided_slice %17 {offsets = [0, 96], sizes = [8, 32], strides = [1, 1]} : vector<8x128xf32> to vector<8x32xf32>
    %23 = arith.mulf %20, %5 : vector<8x32xf32>
    %24 = arith.mulf %19, %21 : vector<8x32xf32>
    %25 = arith.addf %23, %24 : vector<8x32xf32>
    %26 = math.tanh %25 : vector<8x32xf32>
    %27 = arith.mulf %22, %26 : vector<8x32xf32>
    %c1_i32 = arith.constant 1 : i32
    %28 = arith.index_cast %c1_i32 : i32 to index
    %c0_10 = arith.constant 0 : index
    %c0_11 = arith.constant 0 : index
    %29 = vector.load %arg2[%28, %c0_10, %c0_11] : memref<8x8x128xbf16, #tpu.memory_space<vmem>>, vector<1x8x128xbf16>
    %30 = vector.shape_cast %29 : vector<1x8x128xbf16> to vector<8x128xbf16>
    %31 = arith.extf %30 : vector<8x128xbf16> to vector<8x128xf32>
    %32 = arith.truncf %27 : vector<8x32xf32> to vector<8x32xbf16>
    %cst_12 = arith.constant dense<0.000000e+00> : vector<8x128xf32>
    %33 = tpu.matmul %32, %3, %cst_12 {dimension_numbers = #tpu.dot_dimension_numbers<[1], [0], [0], [1], [0, 0, 1, 1], [], []>} : vector<8x32xbf16>, vector<32x128xbf16>, vector<8x128xf32> -> vector<8x128xf32>
    %34 = arith.addf %31, %33 : vector<8x128xf32>
    %35 = arith.negf %34 : vector<8x128xf32>
    %36 = math.exp %35 : vector<8x128xf32>
    %cst_13 = arith.constant 1.000000e+00 : f32
    %37 = vector.broadcast %cst_13 : f32 to vector<8x128xf32>
    %38 = arith.addf %37, %36 : vector<8x128xf32>
    %39 = arith.divf %37, %38 : vector<8x128xf32>
    %40 = math.tanh %34 : vector<8x128xf32>
    %41 = vector.extract_strided_slice %39 {offsets = [0, 0], sizes = [8, 32], strides = [1, 1]} : vector<8x128xf32> to vector<8x32xf32>
    %42 = vector.extract_strided_slice %39 {offsets = [0, 32], sizes = [8, 32], strides = [1, 1]} : vector<8x128xf32> to vector<8x32xf32>
    %43 = vector.extract_strided_slice %40 {offsets = [0, 64], sizes = [8, 32], strides = [1, 1]} : vector<8x128xf32> to vector<8x32xf32>
    %44 = vector.extract_strided_slice %39 {offsets = [0, 96], sizes = [8, 32], strides = [1, 1]} : vector<8x128xf32> to vector<8x32xf32>
    %45 = arith.mulf %42, %25 : vector<8x32xf32>
    %46 = arith.mulf %41, %43 : vector<8x32xf32>
    %47 = arith.addf %45, %46 : vector<8x32xf32>
    %48 = math.tanh %47 : vector<8x32xf32>
    %49 = arith.mulf %44, %48 : vector<8x32xf32>
    %c2_i32 = arith.constant 2 : i32
    %50 = arith.index_cast %c2_i32 : i32 to index
    %c0_14 = arith.constant 0 : index
    %c0_15 = arith.constant 0 : index
    %51 = vector.load %arg2[%50, %c0_14, %c0_15] : memref<8x8x128xbf16, #tpu.memory_space<vmem>>, vector<1x8x128xbf16>
    %52 = vector.shape_cast %51 : vector<1x8x128xbf16> to vector<8x128xbf16>
    %53 = arith.extf %52 : vector<8x128xbf16> to vector<8x128xf32>
    %54 = arith.truncf %49 : vector<8x32xf32> to vector<8x32xbf16>
    %cst_16 = arith.constant dense<0.000000e+00> : vector<8x128xf32>
    %55 = tpu.matmul %54, %3, %cst_16 {dimension_numbers = #tpu.dot_dimension_numbers<[1], [0], [0], [1], [0, 0, 1, 1], [], []>} : vector<8x32xbf16>, vector<32x128xbf16>, vector<8x128xf32> -> vector<8x128xf32>
    %56 = arith.addf %53, %55 : vector<8x128xf32>
    %57 = arith.negf %56 : vector<8x128xf32>
    %58 = math.exp %57 : vector<8x128xf32>
    %cst_17 = arith.constant 1.000000e+00 : f32
    %59 = vector.broadcast %cst_17 : f32 to vector<8x128xf32>
    %60 = arith.addf %59, %58 : vector<8x128xf32>
    %61 = arith.divf %59, %60 : vector<8x128xf32>
    %62 = math.tanh %56 : vector<8x128xf32>
    %63 = vector.extract_strided_slice %61 {offsets = [0, 0], sizes = [8, 32], strides = [1, 1]} : vector<8x128xf32> to vector<8x32xf32>
    %64 = vector.extract_strided_slice %61 {offsets = [0, 32], sizes = [8, 32], strides = [1, 1]} : vector<8x128xf32> to vector<8x32xf32>
    %65 = vector.extract_strided_slice %62 {offsets = [0, 64], sizes = [8, 32], strides = [1, 1]} : vector<8x128xf32> to vector<8x32xf32>
    %66 = vector.extract_strided_slice %61 {offsets = [0, 96], sizes = [8, 32], strides = [1, 1]} : vector<8x128xf32> to vector<8x32xf32>
    %67 = arith.mulf %64, %47 : vector<8x32xf32>
    %68 = arith.mulf %63, %65 : vector<8x32xf32>
    %69 = arith.addf %67, %68 : vector<8x32xf32>
    %70 = math.tanh %69 : vector<8x32xf32>
    %71 = arith.mulf %66, %70 : vector<8x32xf32>
    %c3_i32 = arith.constant 3 : i32
    %72 = arith.index_cast %c3_i32 : i32 to index
    %c0_18 = arith.constant 0 : index
    %c0_19 = arith.constant 0 : index
    %73 = vector.load %arg2[%72, %c0_18, %c0_19] : memref<8x8x128xbf16, #tpu.memory_space<vmem>>, vector<1x8x128xbf16>
    %74 = vector.shape_cast %73 : vector<1x8x128xbf16> to vector<8x128xbf16>
    %75 = arith.extf %74 : vector<8x128xbf16> to vector<8x128xf32>
    %76 = arith.truncf %71 : vector<8x32xf32> to vector<8x32xbf16>
    %cst_20 = arith.constant dense<0.000000e+00> : vector<8x128xf32>
    %77 = tpu.matmul %76, %3, %cst_20 {dimension_numbers = #tpu.dot_dimension_numbers<[1], [0], [0], [1], [0, 0, 1, 1], [], []>} : vector<8x32xbf16>, vector<32x128xbf16>, vector<8x128xf32> -> vector<8x128xf32>
    %78 = arith.addf %75, %77 : vector<8x128xf32>
    %79 = arith.negf %78 : vector<8x128xf32>
    %80 = math.exp %79 : vector<8x128xf32>
    %cst_21 = arith.constant 1.000000e+00 : f32
    %81 = vector.broadcast %cst_21 : f32 to vector<8x128xf32>
    %82 = arith.addf %81, %80 : vector<8x128xf32>
    %83 = arith.divf %81, %82 : vector<8x128xf32>
    %84 = math.tanh %78 : vector<8x128xf32>
    %85 = vector.extract_strided_slice %83 {offsets = [0, 0], sizes = [8, 32], strides = [1, 1]} : vector<8x128xf32> to vector<8x32xf32>
    %86 = vector.extract_strided_slice %83 {offsets = [0, 32], sizes = [8, 32], strides = [1, 1]} : vector<8x128xf32> to vector<8x32xf32>
    %87 = vector.extract_strided_slice %84 {offsets = [0, 64], sizes = [8, 32], strides = [1, 1]} : vector<8x128xf32> to vector<8x32xf32>
    %88 = vector.extract_strided_slice %83 {offsets = [0, 96], sizes = [8, 32], strides = [1, 1]} : vector<8x128xf32> to vector<8x32xf32>
    %89 = arith.mulf %86, %69 : vector<8x32xf32>
    %90 = arith.mulf %85, %87 : vector<8x32xf32>
    %91 = arith.addf %89, %90 : vector<8x32xf32>
    %92 = math.tanh %91 : vector<8x32xf32>
    %93 = arith.mulf %88, %92 : vector<8x32xf32>
    %c4_i32 = arith.constant 4 : i32
    %94 = arith.index_cast %c4_i32 : i32 to index
    %c0_22 = arith.constant 0 : index
    %c0_23 = arith.constant 0 : index
    %95 = vector.load %arg2[%94, %c0_22, %c0_23] : memref<8x8x128xbf16, #tpu.memory_space<vmem>>, vector<1x8x128xbf16>
    %96 = vector.shape_cast %95 : vector<1x8x128xbf16> to vector<8x128xbf16>
    %97 = arith.extf %96 : vector<8x128xbf16> to vector<8x128xf32>
    %98 = arith.truncf %93 : vector<8x32xf32> to vector<8x32xbf16>
    %cst_24 = arith.constant dense<0.000000e+00> : vector<8x128xf32>
    %99 = tpu.matmul %98, %3, %cst_24 {dimension_numbers = #tpu.dot_dimension_numbers<[1], [0], [0], [1], [0, 0, 1, 1], [], []>} : vector<8x32xbf16>, vector<32x128xbf16>, vector<8x128xf32> -> vector<8x128xf32>
    %100 = arith.addf %97, %99 : vector<8x128xf32>
    %101 = arith.negf %100 : vector<8x128xf32>
    %102 = math.exp %101 : vector<8x128xf32>
    %cst_25 = arith.constant 1.000000e+00 : f32
    %103 = vector.broadcast %cst_25 : f32 to vector<8x128xf32>
    %104 = arith.addf %103, %102 : vector<8x128xf32>
    %105 = arith.divf %103, %104 : vector<8x128xf32>
    %106 = math.tanh %100 : vector<8x128xf32>
    %107 = vector.extract_strided_slice %105 {offsets = [0, 0], sizes = [8, 32], strides = [1, 1]} : vector<8x128xf32> to vector<8x32xf32>
    %108 = vector.extract_strided_slice %105 {offsets = [0, 32], sizes = [8, 32], strides = [1, 1]} : vector<8x128xf32> to vector<8x32xf32>
    %109 = vector.extract_strided_slice %106 {offsets = [0, 64], sizes = [8, 32], strides = [1, 1]} : vector<8x128xf32> to vector<8x32xf32>
    %110 = vector.extract_strided_slice %105 {offsets = [0, 96], sizes = [8, 32], strides = [1, 1]} : vector<8x128xf32> to vector<8x32xf32>
    %111 = arith.mulf %108, %91 : vector<8x32xf32>
    %112 = arith.mulf %107, %109 : vector<8x32xf32>
    %113 = arith.addf %111, %112 : vector<8x32xf32>
    %114 = math.tanh %113 : vector<8x32xf32>
    %115 = arith.mulf %110, %114 : vector<8x32xf32>
    %c5_i32 = arith.constant 5 : i32
    %116 = arith.index_cast %c5_i32 : i32 to index
    %c0_26 = arith.constant 0 : index
    %c0_27 = arith.constant 0 : index
    %117 = vector.load %arg2[%116, %c0_26, %c0_27] : memref<8x8x128xbf16, #tpu.memory_space<vmem>>, vector<1x8x128xbf16>
    %118 = vector.shape_cast %117 : vector<1x8x128xbf16> to vector<8x128xbf16>
    %119 = arith.extf %118 : vector<8x128xbf16> to vector<8x128xf32>
    %120 = arith.truncf %115 : vector<8x32xf32> to vector<8x32xbf16>
    %cst_28 = arith.constant dense<0.000000e+00> : vector<8x128xf32>
    %121 = tpu.matmul %120, %3, %cst_28 {dimension_numbers = #tpu.dot_dimension_numbers<[1], [0], [0], [1], [0, 0, 1, 1], [], []>} : vector<8x32xbf16>, vector<32x128xbf16>, vector<8x128xf32> -> vector<8x128xf32>
    %122 = arith.addf %119, %121 : vector<8x128xf32>
    %123 = arith.negf %122 : vector<8x128xf32>
    %124 = math.exp %123 : vector<8x128xf32>
    %cst_29 = arith.constant 1.000000e+00 : f32
    %125 = vector.broadcast %cst_29 : f32 to vector<8x128xf32>
    %126 = arith.addf %125, %124 : vector<8x128xf32>
    %127 = arith.divf %125, %126 : vector<8x128xf32>
    %128 = math.tanh %122 : vector<8x128xf32>
    %129 = vector.extract_strided_slice %127 {offsets = [0, 0], sizes = [8, 32], strides = [1, 1]} : vector<8x128xf32> to vector<8x32xf32>
    %130 = vector.extract_strided_slice %127 {offsets = [0, 32], sizes = [8, 32], strides = [1, 1]} : vector<8x128xf32> to vector<8x32xf32>
    %131 = vector.extract_strided_slice %128 {offsets = [0, 64], sizes = [8, 32], strides = [1, 1]} : vector<8x128xf32> to vector<8x32xf32>
    %132 = vector.extract_strided_slice %127 {offsets = [0, 96], sizes = [8, 32], strides = [1, 1]} : vector<8x128xf32> to vector<8x32xf32>
    %133 = arith.mulf %130, %113 : vector<8x32xf32>
    %134 = arith.mulf %129, %131 : vector<8x32xf32>
    %135 = arith.addf %133, %134 : vector<8x32xf32>
    %136 = math.tanh %135 : vector<8x32xf32>
    %137 = arith.mulf %132, %136 : vector<8x32xf32>
    %c6_i32 = arith.constant 6 : i32
    %138 = arith.index_cast %c6_i32 : i32 to index
    %c0_30 = arith.constant 0 : index
    %c0_31 = arith.constant 0 : index
    %139 = vector.load %arg2[%138, %c0_30, %c0_31] : memref<8x8x128xbf16, #tpu.memory_space<vmem>>, vector<1x8x128xbf16>
    %140 = vector.shape_cast %139 : vector<1x8x128xbf16> to vector<8x128xbf16>
    %141 = arith.extf %140 : vector<8x128xbf16> to vector<8x128xf32>
    %142 = arith.truncf %137 : vector<8x32xf32> to vector<8x32xbf16>
    %cst_32 = arith.constant dense<0.000000e+00> : vector<8x128xf32>
    %143 = tpu.matmul %142, %3, %cst_32 {dimension_numbers = #tpu.dot_dimension_numbers<[1], [0], [0], [1], [0, 0, 1, 1], [], []>} : vector<8x32xbf16>, vector<32x128xbf16>, vector<8x128xf32> -> vector<8x128xf32>
    %144 = arith.addf %141, %143 : vector<8x128xf32>
    %145 = arith.negf %144 : vector<8x128xf32>
    %146 = math.exp %145 : vector<8x128xf32>
    %cst_33 = arith.constant 1.000000e+00 : f32
    %147 = vector.broadcast %cst_33 : f32 to vector<8x128xf32>
    %148 = arith.addf %147, %146 : vector<8x128xf32>
    %149 = arith.divf %147, %148 : vector<8x128xf32>
    %150 = math.tanh %144 : vector<8x128xf32>
    %151 = vector.extract_strided_slice %149 {offsets = [0, 0], sizes = [8, 32], strides = [1, 1]} : vector<8x128xf32> to vector<8x32xf32>
    %152 = vector.extract_strided_slice %149 {offsets = [0, 32], sizes = [8, 32], strides = [1, 1]} : vector<8x128xf32> to vector<8x32xf32>
    %153 = vector.extract_strided_slice %150 {offsets = [0, 64], sizes = [8, 32], strides = [1, 1]} : vector<8x128xf32> to vector<8x32xf32>
    %154 = vector.extract_strided_slice %149 {offsets = [0, 96], sizes = [8, 32], strides = [1, 1]} : vector<8x128xf32> to vector<8x32xf32>
    %155 = arith.mulf %152, %135 : vector<8x32xf32>
    %156 = arith.mulf %151, %153 : vector<8x32xf32>
    %157 = arith.addf %155, %156 : vector<8x32xf32>
    %158 = math.tanh %157 : vector<8x32xf32>
    %159 = arith.mulf %154, %158 : vector<8x32xf32>
    %c7_i32 = arith.constant 7 : i32
    %160 = arith.index_cast %c7_i32 : i32 to index
    %c0_34 = arith.constant 0 : index
    %c0_35 = arith.constant 0 : index
    %161 = vector.load %arg2[%160, %c0_34, %c0_35] : memref<8x8x128xbf16, #tpu.memory_space<vmem>>, vector<1x8x128xbf16>
    %162 = vector.shape_cast %161 : vector<1x8x128xbf16> to vector<8x128xbf16>
    %163 = arith.extf %162 : vector<8x128xbf16> to vector<8x128xf32>
    %164 = arith.truncf %159 : vector<8x32xf32> to vector<8x32xbf16>
    %cst_36 = arith.constant dense<0.000000e+00> : vector<8x128xf32>
    %165 = tpu.matmul %164, %3, %cst_36 {dimension_numbers = #tpu.dot_dimension_numbers<[1], [0], [0], [1], [0, 0, 1, 1], [], []>} : vector<8x32xbf16>, vector<32x128xbf16>, vector<8x128xf32> -> vector<8x128xf32>
    %166 = arith.addf %163, %165 : vector<8x128xf32>
    %167 = arith.negf %166 : vector<8x128xf32>
    %168 = math.exp %167 : vector<8x128xf32>
    %cst_37 = arith.constant 1.000000e+00 : f32
    %169 = vector.broadcast %cst_37 : f32 to vector<8x128xf32>
    %170 = arith.addf %169, %168 : vector<8x128xf32>
    %171 = arith.divf %169, %170 : vector<8x128xf32>
    %172 = math.tanh %166 : vector<8x128xf32>
    %173 = vector.extract_strided_slice %171 {offsets = [0, 0], sizes = [8, 32], strides = [1, 1]} : vector<8x128xf32> to vector<8x32xf32>
    %174 = vector.extract_strided_slice %171 {offsets = [0, 32], sizes = [8, 32], strides = [1, 1]} : vector<8x128xf32> to vector<8x32xf32>
    %175 = vector.extract_strided_slice %172 {offsets = [0, 64], sizes = [8, 32], strides = [1, 1]} : vector<8x128xf32> to vector<8x32xf32>
    %176 = vector.extract_strided_slice %171 {offsets = [0, 96], sizes = [8, 32], strides = [1, 1]} : vector<8x128xf32> to vector<8x32xf32>
    %177 = arith.mulf %174, %157 : vector<8x32xf32>
    %178 = arith.mulf %173, %175 : vector<8x32xf32>
    %179 = arith.addf %177, %178 : vector<8x32xf32>
    %180 = math.tanh %179 : vector<8x32xf32>
    %181 = arith.mulf %176, %180 : vector<8x32xf32>
    %c8_i32 = arith.constant 8 : i32
    %c0_38 = arith.constant 0 : index
    %c0_39 = arith.constant 0 : index
    %182 = vector.load %arg5[%c0_38, %c0_39] : memref<8x32xf32, #tpu.memory_space<vmem>>, vector<8x32xf32>
    tpu.vector_store %arg5[%c0_38, %c0_39], %181 {strides = array<i32>} : memref<8x32xf32, #tpu.memory_space<vmem>>, vector<8x32xf32>,
    %c0_40 = arith.constant 0 : index
    %c0_41 = arith.constant 0 : index
    %183 = vector.load %arg6[%c0_40, %c0_41] : memref<8x32xf32, #tpu.memory_space<vmem>>, vector<8x32xf32>
    tpu.vector_store %arg6[%c0_40, %c0_41], %179 {strides = array<i32>} : memref<8x32xf32, #tpu.memory_space<vmem>>, vector<8x32xf32>,
    %c0_i32_42 = arith.constant 0 : i32
    %184 = arith.cmpi eq, %arg1, %c0_i32_42 : i32
    %185 = arith.extui %184 : i1 to i32
    %c0_i32_43 = arith.constant 0 : i32
    %186 = arith.cmpi ne, %185, %c0_i32_43 : i32
    scf.if %186 {
      %c0_44 = arith.constant 0 : index
      %c0_45 = arith.constant 0 : index
      %187 = vector.load %arg4[%c0_44, %c0_45] : memref<8x32xf32, #tpu.memory_space<vmem>>, vector<8x32xf32>
      tpu.vector_store %arg4[%c0_44, %c0_45], %181 {strides = array<i32>} : memref<8x32xf32, #tpu.memory_space<vmem>>, vector<8x32xf32>,
    } else {
    }
    return
  }
  func.func @transform_0(%arg0: i32, %arg1: i32) -> (i32, i32, i32) {
    %c0_i32 = arith.constant 0 : i32
    %c0_i32_0 = arith.constant 0 : i32
    return %arg1, %arg0, %c0_i32 : i32, i32, i32
  }
  func.func @transform_1(%arg0: i32, %arg1: i32) -> (i32, i32) {
    %c0_i32 = arith.constant 0 : i32
    %c0_i32_0 = arith.constant 0 : i32
    %c0_i32_1 = arith.constant 0 : i32
    return %c0_i32, %c0_i32_0 : i32, i32
  }
  func.func @transform_2(%arg0: i32, %arg1: i32) -> (i32, i32) {
    %c0_i32 = arith.constant 0 : i32
    %c0_i32_0 = arith.constant 0 : i32
    return %arg0, %c0_i32 : i32, i32
  }
}

</mosaic_0001>

<llo_original>
// kernel: tpu_custom_call.1
$region0: #{tpu_custom_call.1}
  #allocation0 [shape = 'u32[]', space=smem, size = 0x4, offset = 0x4, fixed_abs, tag = 'smem constant byte address 0x4 - core index']
  #allocation1 [shape = 'u32[144,128]{1,0:T(1,128)}', space=vmem, size = 0x12000, scoped, tag = 'internal scratch']
  #allocation2 [shape = 'f32[8,32]{1,0:T(8,128)}', space=vmem, size = 0x1000, scoped, tag = 'scratch operand']
  #allocation3 [shape = 'f32[8,32]{1,0:T(8,128)}', space=vmem, size = 0x1000, scoped, tag = 'scratch operand']
  %s0 = inlined_call_operand.hbm [shape: bf16[8,8,128], index: 0, kind: input, shape index: {}]
  %s1 = inlined_call_operand.hbm [shape: bf16[32,128], index: 1, kind: input, shape index: {}]
  %s2 = inlined_call_operand.hbm [shape: f32[8,32], index: 2, kind: output, shape index: {}]
  %s3 = sld [smem:[#allocation0]]
  $region34: #{tpu_custom_call.1} parent=0
    _
  %s5 = ssub.s32 1, %s3
  %s6 = scalar_select 0, %s5, %s3
  $region1: #{tpu_custom_call.1} parent=0
    #allocation4 [shape = 'u8[16384]{0}', space=vmem, size = 0x4000, scoped, tag = 'input window, operand 0, single buffered']
    #allocation5 [shape = 's32[1]{0}', space=sflag, size = 0x4, scoped, tag = 'scoped memory for tpu_custom_call.1']
    #allocation6 [shape = 's32[1]{0}', space=sflag, size = 0x4, scoped, tag = 'scoped memory for tpu_custom_call.1']
    #allocation7 [shape = 'u8[8192]{0}', space=vmem, size = 0x2000, scoped, tag = 'input window, operand 1, single buffered']
    #allocation8 [shape = 's32[1]{0}', space=sflag, size = 0x4, scoped, tag = 'scoped memory for tpu_custom_call.1']
    #allocation9 [shape = 'u8[4096]{0}', space=vmem, size = 0x1000, scoped, tag = 'output window, operand 0, single buffered']
    %7 = vsyncpa [#allocation5], 0
    %8 = vsyncpa [#allocation8], 0
    %9 = vsyncpa [#allocation6], 0
    // Predicated region
    $region2: #{tpu_custom_call.1} parent=1 // pred_check
      _
    $region3: #{tpu_custom_call.1} parent=1 // pred_check_branch
      %11 = sbr.rel (0) target = $region5
    $region4: #{tpu_custom_call.1} parent=1 // pred_region
      %s13 = ssub.s32 512, 512
      %14 = vsyncadd [#allocation5], %s13
      %s15 = sshll.u32 [#allocation4], 4
      %s16 = int_to_ptr.vmem [resolvable:$true] %s15
      %21 = dma.hbm_to_vmem [thread:$0]  %s0, 512, %s16, [#allocation5], 64, 64, 4
    $region5: #{tpu_custom_call.1} parent=1 // pred_fallthru
      _
    // Predicated region
    $region6: #{tpu_custom_call.1} parent=1 // pred_check
      _
    $region7: #{tpu_custom_call.1} parent=1 // pred_check_branch
      %23 = sbr.rel (0) target = $region9
    $region8: #{tpu_custom_call.1} parent=1 // pred_region
      %s25 = ssub.s32 256, 256
      %26 = vsyncadd [#allocation8], %s25
      %s27 = sshll.u32 [#allocation7], 4
      %s28 = int_to_ptr.vmem [resolvable:$true] %s27
      %33 = dma.hbm_to_vmem [thread:$0]  %s1, 256, %s28, [#allocation8], 64, 64, 4
    $region9: #{tpu_custom_call.1} parent=1 // pred_fallthru
      _
    // Predicated region
    $region10: #{tpu_custom_call.1} parent=1 // pred_check
      _
    $region11: #{tpu_custom_call.1} parent=1 // pred_check_branch
      %35 = sbr.rel (0) target = $region13
    $region12: #{tpu_custom_call.1} parent=1 // pred_region
      %36 = dma.done [#allocation5], 512
    $region13: #{tpu_custom_call.1} parent=1 // pred_fallthru
      _
    // Predicated region
    $region14: #{tpu_custom_call.1} parent=1 // pred_check
      _
    $region15: #{tpu_custom_call.1} parent=1 // pred_check_branch
      %38 = sbr.rel (0) target = $region17
    $region16: #{tpu_custom_call.1} parent=1 // pred_region
      %39 = dma.done [#allocation8], 256
    $region17: #{tpu_custom_call.1} parent=1 // pred_fallthru
      _
    %p41 = scmp.eq.s32.totalorder 0, 0
    // Predicated region
    $region18: #{tpu_custom_call.1} parent=1 // pred_check
      %p42 = pneg %p41
    $region19: #{tpu_custom_call.1} parent=1 // pred_check_branch
      %44 = sbr.rel (%p42) target = $region21
    $region20: #{tpu_custom_call.1} parent=1 // pred_region
      %vm45 = vcmask 261120
      %46 = vst.msk [vmem:[#allocation2] sm:$0xff] %vm45, 0.0
      %47 = vst.msk [vmem:[#allocation3] sm:$0xff] %vm45, 0.0
    $region21: #{tpu_custom_call.1} parent=1 // pred_fallthru
      _
    %v48 = vld [vmem:[#allocation7] sm:$0xf]
    %v49 = vld [vmem:[#allocation7 + $0x4] sm:$0xf]
    %v50 = vld [vmem:[#allocation7 + $0x8] sm:$0xf]
    %v51 = vld [vmem:[#allocation7 + $0xc] sm:$0xf]
    %v52 = vld [vmem:[#allocation2] sm:$0xff]
    %v53 = vld [vmem:[#allocation3] sm:$0xff]
    %v54 = vld [vmem:[#allocation4] sm:$0xf]
    %v55 = vunpack.c.l.bf16 %v54
    %v56 = vpack.c.bf16 %v52, %v52
    %v61 = vunpack.c.l.b16 %v48
    %v62 = vunpack.c.l.b16 %v49
    %v63 = vunpack.c.l.b16 %v50
    %v64 = vunpack.c.l.b16 %v51
    %v65 = vpack.c.b16 %v62, %v61
    %v66 = vpack.c.b16 %v64, %v63
    %vm69 = vcmask 261120
    %v71 = vsel %vm69, %v56, 0
    %73 = vmatprep.subr.bf16.mxu0 0
    %74 = vmatpush1.bf16.msra.mxu0 0
    %75 = vmatprep.subr.bf16.mxu0 0
    %76 = vmatpush1.bf16.msra.mxu0 0
    %77 = vmatprep.subr.bf16.mxu0 0
    %78 = vmatpush1.bf16.msra.mxu0 0
    %79 = vmatprep.subr.bf16.mxu0 0
    %80 = vmatpush1.bf16.msra.mxu0 0
    %81 = vmatprep.subr.bf16.mxu0 0
    %82 = vmatpush1.bf16.msra.mxu0 0
    %83 = vmatprep.subr.bf16.mxu0 0
    %84 = vmatpush1.bf16.msra.mxu0 0
    %85 = vmatprep.subr.bf16.mxu0 0
    %86 = vmatpush1.bf16.msra.mxu0 %v66
    %87 = vmatprep.subr.bf16.mxu0 0
    %88 = vmatpush1.bf16.msra.mxu0 %v65
    %89 = vmatprep.subr.bf16.mxu0 0
    %90 = vmatpush2.bf16.msra.mxu0 0
    %91 = vmatprep.subr.bf16.mxu0 0
    %92 = vmatpush2.bf16.msra.mxu0 0
    %93 = vmatprep.subr.bf16.mxu0 0
    %94 = vmatpush2.bf16.msra.mxu0 0
    %95 = vmatprep.subr.bf16.mxu0 0
    %96 = vmatpush2.bf16.msra.mxu0 0
    %97 = vmatprep.subr.bf16.mxu0 0
    %98 = vmatpush2.bf16.msra.mxu0 0
    %99 = vmatprep.subr.bf16.mxu0 0
    %100 = vmatpush2.bf16.msra.mxu0 0
    %101 = vmatprep.subr.bf16.mxu0 0
    %102 = vmatpush2.bf16.msra.mxu0 0
    %103 = vmatprep.subr.bf16.mxu0 0
    %104 = vmatpush2.bf16.msra.mxu0 0
    %105 = vmatprep.mubr.bf16.mxu0 0
    %106 = vmatmul.mubr.bf16.gmra.mxu0 %v71
    %v107 = vpop.f32.mrf.mxu0
    %v108 = vadd.f32 0.0, %v107
    %v109 = vpop.f32.mrf.mxu0
    %v110 = vpop.f32.mrf.mxu0
    %v111 = vpop.f32.mrf.mxu0
    %112 = vdwg.mxu0
    %v113 = vadd.f32 %v55, %v108
    %v114 = vxor.u32 %v113, 2147483648
    %v115 = vmul.f32 %v114, 1.442695
    %v116 = vpow.pop %v115
    %v117 = vadd.f32 %v116, 1.0
    %v118 = vrcp.pop %v117
    %v119 = vmul.f32 1.0, %v118
    %v120 = vtanh.pop %v113
    %122 = vrot.lane.b32.xlu0 %v53, 32
    %v123 = vpop.permute.xlu0 %122
    %v125 = vmul.f32 %v119, %v123
    %127 = vrot.lane.b32.xlu0 %v120, 64
    %v128 = vpop.permute.xlu0 %127
    %v130 = vmul.f32 %v119, %v128
    %132 = vrot.lane.b32.xlu0 %v130, 32
    %v133 = vpop.permute.xlu0 %132
    %v135 = vadd.f32 %v125, %v133
    %v136 = vtanh.pop %v135
    %138 = vrot.lane.b32.xlu0 %v136, 64
    %v139 = vpop.permute.xlu0 %138
    %v141 = vmul.f32 %v119, %v139
    %s142 = scalar_lea.vmem [#allocation4], 4
    %v143 = vld [vmem:[%s142] sm:$0xf]
    %v144 = vunpack.c.l.bf16 %v143
    %v145 = vpack.c.bf16 %v141, %v141
    %147 = vrot.lane.b32.xlu0 %v145, 32
    %v148 = vpop.permute.xlu0 %147
    %v150 = vsel %vm69, %v148, 0
    %152 = vmatprep.subr.bf16.mxu0 0
    %153 = vmatpush1.bf16.msra.mxu0 0
    %154 = vmatprep.subr.bf16.mxu0 0
    %155 = vmatpush1.bf16.msra.mxu0 0
    %156 = vmatprep.subr.bf16.mxu0 0
    %157 = vmatpush1.bf16.msra.mxu0 0
    %158 = vmatprep.subr.bf16.mxu0 0
    %159 = vmatpush1.bf16.msra.mxu0 0
    %160 = vmatprep.subr.bf16.mxu0 0
    %161 = vmatpush1.bf16.msra.mxu0 0
    %162 = vmatprep.subr.bf16.mxu0 0
    %163 = vmatpush1.bf16.msra.mxu0 0
    %164 = vmatprep.subr.bf16.mxu0 0
    %165 = vmatpush1.bf16.msra.mxu0 %v66
    %166 = vmatprep.subr.bf16.mxu0 0
    %167 = vmatpush1.bf16.msra.mxu0 %v65
    %168 = vmatprep.subr.bf16.mxu0 0
    %169 = vmatpush2.bf16.msra.mxu0 0
    %170 = vmatprep.subr.bf16.mxu0 0
    %171 = vmatpush2.bf16.msra.mxu0 0
    %172 = vmatprep.subr.bf16.mxu0 0
    %173 = vmatpush2.bf16.msra.mxu0 0
    %174 = vmatprep.subr.bf16.mxu0 0
    %175 = vmatpush2.bf16.msra.mxu0 0
    %176 = vmatprep.subr.bf16.mxu0 0
    %177 = vmatpush2.bf16.msra.mxu0 0
    %178 = vmatprep.subr.bf16.mxu0 0
    %179 = vmatpush2.bf16.msra.mxu0 0
    %180 = vmatprep.subr.bf16.mxu0 0
    %181 = vmatpush2.bf16.msra.mxu0 0
    %182 = vmatprep.subr.bf16.mxu0 0
    %183 = vmatpush2.bf16.msra.mxu0 0
    %184 = vmatprep.mubr.bf16.mxu0 0
    %185 = vmatmul.mubr.bf16.gmra.mxu0 %v150
    %v186 = vpop.f32.mrf.mxu0
    %v187 = vadd.f32 0.0, %v186
    %v188 = vpop.f32.mrf.mxu0
    %v189 = vpop.f32.mrf.mxu0
    %v190 = vpop.f32.mrf.mxu0
    %191 = vdwg.mxu0
    %v192 = vadd.f32 %v144, %v187
    %v193 = vxor.u32 %v192, 2147483648
    %v194 = vmul.f32 %v193, 1.442695
    %v195 = vpow.pop %v194
    %v196 = vadd.f32 %v195, 1.0
    %v197 = vrcp.pop %v196
    %v198 = vmul.f32 1.0, %v197
    %v199 = vtanh.pop %v192
    %v200 = vmul.f32 %v198, %v135
    %202 = vrot.lane.b32.xlu0 %v199, 64
    %v203 = vpop.permute.xlu0 %202
    %v205 = vmul.f32 %v198, %v203
    %207 = vrot.lane.b32.xlu0 %v205, 32
    %v208 = vpop.permute.xlu0 %207
    %v210 = vadd.f32 %v200, %v208
    %v211 = vtanh.pop %v210
    %213 = vrot.lane.b32.xlu0 %v211, 64
    %v214 = vpop.permute.xlu0 %213
    %v216 = vmul.f32 %v198, %v214
    %s217 = scalar_lea.vmem [#allocation4], 8
    %v218 = vld [vmem:[%s217] sm:$0xf]
    %v219 = vunpack.c.l.bf16 %v218
    %v220 = vpack.c.bf16 %v216, %v216
    %222 = vrot.lane.b32.xlu0 %v220, 32
    %v223 = vpop.permute.xlu0 %222
    %v225 = vsel %vm69, %v223, 0
    %227 = vmatprep.subr.bf16.mxu0 0
    %228 = vmatpush1.bf16.msra.mxu0 0
    %229 = vmatprep.subr.bf16.mxu0 0
    %230 = vmatpush1.bf16.msra.mxu0 0
    %231 = vmatprep.subr.bf16.mxu0 0
    %232 = vmatpush1.bf16.msra.mxu0 0
    %233 = vmatprep.subr.bf16.mxu0 0
    %234 = vmatpush1.bf16.msra.mxu0 0
    %235 = vmatprep.subr.bf16.mxu0 0
    %236 = vmatpush1.bf16.msra.mxu0 0
    %237 = vmatprep.subr.bf16.mxu0 0
    %238 = vmatpush1.bf16.msra.mxu0 0
    %239 = vmatprep.subr.bf16.mxu0 0
    %240 = vmatpush1.bf16.msra.mxu0 %v66
    %241 = vmatprep.subr.bf16.mxu0 0
    %242 = vmatpush1.bf16.msra.mxu0 %v65
    %243 = vmatprep.subr.bf16.mxu0 0
    %244 = vmatpush2.bf16.msra.mxu0 0
    %245 = vmatprep.subr.bf16.mxu0 0
    %246 = vmatpush2.bf16.msra.mxu0 0
    %247 = vmatprep.subr.bf16.mxu0 0
    %248 = vmatpush2.bf16.msra.mxu0 0
    %249 = vmatprep.subr.bf16.mxu0 0
    %250 = vmatpush2.bf16.msra.mxu0 0
    %251 = vmatprep.subr.bf16.mxu0 0
    %252 = vmatpush2.bf16.msra.mxu0 0
    %253 = vmatprep.subr.bf16.mxu0 0
    %254 = vmatpush2.bf16.msra.mxu0 0
    %255 = vmatprep.subr.bf16.mxu0 0
    %256 = vmatpush2.bf16.msra.mxu0 0
    %257 = vmatprep.subr.bf16.mxu0 0
    %258 = vmatpush2.bf16.msra.mxu0 0
    %259 = vmatprep.mubr.bf16.mxu0 0
    %260 = vmatmul.mubr.bf16.gmra.mxu0 %v225
    %v261 = vpop.f32.mrf.mxu0
    %v262 = vadd.f32 0.0, %v261
    %v263 = vpop.f32.mrf.mxu0
    %v264 = vpop.f32.mrf.mxu0
    %v265 = vpop.f32.mrf.mxu0
    %266 = vdwg.mxu0
    %v267 = vadd.f32 %v219, %v262
    %v268 = vxor.u32 %v267, 2147483648
    %v269 = vmul.f32 %v268, 1.442695
    %v270 = vpow.pop %v269
    %v271 = vadd.f32 %v270, 1.0
    %v272 = vrcp.pop %v271
    %v273 = vmul.f32 1.0, %v272
    %v274 = vtanh.pop %v267
    %v275 = vmul.f32 %v273, %v210
    %277 = vrot.lane.b32.xlu0 %v274, 64
    %v278 = vpop.permute.xlu0 %277
    %v280 = vmul.f32 %v273, %v278
    %282 = vrot.lane.b32.xlu0 %v280, 32
    %v283 = vpop.permute.xlu0 %282
    %v285 = vadd.f32 %v275, %v283
    %v286 = vtanh.pop %v285
    %288 = vrot.lane.b32.xlu0 %v286, 64
    %v289 = vpop.permute.xlu0 %288
    %v291 = vmul.f32 %v273, %v289
    %s292 = scalar_lea.vmem [#allocation4], 12
    %v293 = vld [vmem:[%s292] sm:$0xf]
    %v294 = vunpack.c.l.bf16 %v293
    %v295 = vpack.c.bf16 %v291, %v291
    %297 = vrot.lane.b32.xlu0 %v295, 32
    %v298 = vpop.permute.xlu0 %297
    %v300 = vsel %vm69, %v298, 0
    %302 = vmatprep.subr.bf16.mxu0 0
    %303 = vmatpush1.bf16.msra.mxu0 0
    %304 = vmatprep.subr.bf16.mxu0 0
    %305 = vmatpush1.bf16.msra.mxu0 0
    %306 = vmatprep.subr.bf16.mxu0 0
    %307 = vmatpush1.bf16.msra.mxu0 0
    %308 = vmatprep.subr.bf16.mxu0 0
    %309 = vmatpush1.bf16.msra.mxu0 0
    %310 = vmatprep.subr.bf16.mxu0 0
    %311 = vmatpush1.bf16.msra.mxu0 0
    %312 = vmatprep.subr.bf16.mxu0 0
    %313 = vmatpush1.bf16.msra.mxu0 0
    %314 = vmatprep.subr.bf16.mxu0 0
    %315 = vmatpush1.bf16.msra.mxu0 %v66
    %316 = vmatprep.subr.bf16.mxu0 0
    %317 = vmatpush1.bf16.msra.mxu0 %v65
    %318 = vmatprep.subr.bf16.mxu0 0
    %319 = vmatpush2.bf16.msra.mxu0 0
    %320 = vmatprep.subr.bf16.mxu0 0
    %321 = vmatpush2.bf16.msra.mxu0 0
    %322 = vmatprep.subr.bf16.mxu0 0
    %323 = vmatpush2.bf16.msra.mxu0 0
    %324 = vmatprep.subr.bf16.mxu0 0
    %325 = vmatpush2.bf16.msra.mxu0 0
    %326 = vmatprep.subr.bf16.mxu0 0
    %327 = vmatpush2.bf16.msra.mxu0 0
    %328 = vmatprep.subr.bf16.mxu0 0
    %329 = vmatpush2.bf16.msra.mxu0 0
    %330 = vmatprep.subr.bf16.mxu0 0
    %331 = vmatpush2.bf16.msra.mxu0 0
    %332 = vmatprep.subr.bf16.mxu0 0
    %333 = vmatpush2.bf16.msra.mxu0 0
    %334 = vmatprep.mubr.bf16.mxu0 0
    %335 = vmatmul.mubr.bf16.gmra.mxu0 %v300
    %v336 = vpop.f32.mrf.mxu0
    %v337 = vadd.f32 0.0, %v336
    %v338 = vpop.f32.mrf.mxu0
    %v339 = vpop.f32.mrf.mxu0
    %v340 = vpop.f32.mrf.mxu0
    %341 = vdwg.mxu0
    %v342 = vadd.f32 %v294, %v337
    %v343 = vxor.u32 %v342, 2147483648
    %v344 = vmul.f32 %v343, 1.442695
    %v345 = vpow.pop %v344
    %v346 = vadd.f32 %v345, 1.0
    %v347 = vrcp.pop %v346
    %v348 = vmul.f32 1.0, %v347
    %v349 = vtanh.pop %v342
    %v350 = vmul.f32 %v348, %v285
    %352 = vrot.lane.b32.xlu0 %v349, 64
    %v353 = vpop.permute.xlu0 %352
    %v355 = vmul.f32 %v348, %v353
    %357 = vrot.lane.b32.xlu0 %v355, 32
    %v358 = vpop.permute.xlu0 %357
    %v360 = vadd.f32 %v350, %v358
    %v361 = vtanh.pop %v360
    %363 = vrot.lane.b32.xlu0 %v361, 64
    %v364 = vpop.permute.xlu0 %363
    %v366 = vmul.f32 %v348, %v364
    %s367 = scalar_lea.vmem [#allocation4], 16
    %v368 = vld [vmem:[%s367] sm:$0xf]
    %v369 = vunpack.c.l.bf16 %v368
    %v370 = vpack.c.bf16 %v366, %v366
    %372 = vrot.lane.b32.xlu0 %v370, 32
    %v373 = vpop.permute.xlu0 %372
    %v375 = vsel %vm69, %v373, 0
    %377 = vmatprep.subr.bf16.mxu0 0
    %378 = vmatpush1.bf16.msra.mxu0 0
    %379 = vmatprep.subr.bf16.mxu0 0
    %380 = vmatpush1.bf16.msra.mxu0 0
    %381 = vmatprep.subr.bf16.mxu0 0
    %382 = vmatpush1.bf16.msra.mxu0 0
    %383 = vmatprep.subr.bf16.mxu0 0
    %384 = vmatpush1.bf16.msra.mxu0 0
    %385 = vmatprep.subr.bf16.mxu0 0
    %386 = vmatpush1.bf16.msra.mxu0 0
    %387 = vmatprep.subr.bf16.mxu0 0
    %388 = vmatpush1.bf16.msra.mxu0 0
    %389 = vmatprep.subr.bf16.mxu0 0
    %390 = vmatpush1.bf16.msra.mxu0 %v66
    %391 = vmatprep.subr.bf16.mxu0 0
    %392 = vmatpush1.bf16.msra.mxu0 %v65
    %393 = vmatprep.subr.bf16.mxu0 0
    %394 = vmatpush2.bf16.msra.mxu0 0
    %395 = vmatprep.subr.bf16.mxu0 0
    %396 = vmatpush2.bf16.msra.mxu0 0
    %397 = vmatprep.subr.bf16.mxu0 0
    %398 = vmatpush2.bf16.msra.mxu0 0
    %399 = vmatprep.subr.bf16.mxu0 0
    %400 = vmatpush2.bf16.msra.mxu0 0
    %401 = vmatprep.subr.bf16.mxu0 0
    %402 = vmatpush2.bf16.msra.mxu0 0
    %403 = vmatprep.subr.bf16.mxu0 0
    %404 = vmatpush2.bf16.msra.mxu0 0
    %405 = vmatprep.subr.bf16.mxu0 0
    %406 = vmatpush2.bf16.msra.mxu0 0
    %407 = vmatprep.subr.bf16.mxu0 0
    %408 = vmatpush2.bf16.msra.mxu0 0
    %409 = vmatprep.mubr.bf16.mxu0 0
    %410 = vmatmul.mubr.bf16.gmra.mxu0 %v375
    %v411 = vpop.f32.mrf.mxu0
    %v412 = vadd.f32 0.0, %v411
    %v413 = vpop.f32.mrf.mxu0
    %v414 = vpop.f32.mrf.mxu0
    %v415 = vpop.f32.mrf.mxu0
    %416 = vdwg.mxu0
    %v417 = vadd.f32 %v369, %v412
    %v418 = vxor.u32 %v417, 2147483648
    %v419 = vmul.f32 %v418, 1.442695
    %v420 = vpow.pop %v419
    %v421 = vadd.f32 %v420, 1.0
    %v422 = vrcp.pop %v421
    %v423 = vmul.f32 1.0, %v422
    %v424 = vtanh.pop %v417
    %v425 = vmul.f32 %v423, %v360
    %427 = vrot.lane.b32.xlu0 %v424, 64
    %v428 = vpop.permute.xlu0 %427
    %v430 = vmul.f32 %v423, %v428
    %432 = vrot.lane.b32.xlu0 %v430, 32
    %v433 = vpop.permute.xlu0 %432
    %v435 = vadd.f32 %v425, %v433
    %v436 = vtanh.pop %v435
    %438 = vrot.lane.b32.xlu0 %v436, 64
    %v439 = vpop.permute.xlu0 %438
    %v441 = vmul.f32 %v423, %v439
    %s442 = scalar_lea.vmem [#allocation4], 20
    %v443 = vld [vmem:[%s442] sm:$0xf]
    %v444 = vunpack.c.l.bf16 %v443
    %v445 = vpack.c.bf16 %v441, %v441
    %447 = vrot.lane.b32.xlu0 %v445, 32
    %v448 = vpop.permute.xlu0 %447
    %v450 = vsel %vm69, %v448, 0
    %452 = vmatprep.subr.bf16.mxu0 0
    %453 = vmatpush1.bf16.msra.mxu0 0
    %454 = vmatprep.subr.bf16.mxu0 0
    %455 = vmatpush1.bf16.msra.mxu0 0
    %456 = vmatprep.subr.bf16.mxu0 0
    %457 = vmatpush1.bf16.msra.mxu0 0
    %458 = vmatprep.subr.bf16.mxu0 0
    %459 = vmatpush1.bf16.msra.mxu0 0
    %460 = vmatprep.subr.bf16.mxu0 0
    %461 = vmatpush1.bf16.msra.mxu0 0
    %462 = vmatprep.subr.bf16.mxu0 0
    %463 = vmatpush1.bf16.msra.mxu0 0
    %464 = vmatprep.subr.bf16.mxu0 0
    %465 = vmatpush1.bf16.msra.mxu0 %v66
    %466 = vmatprep.subr.bf16.mxu0 0
    %467 = vmatpush1.bf16.msra.mxu0 %v65
    %468 = vmatprep.subr.bf16.mxu0 0
    %469 = vmatpush2.bf16.msra.mxu0 0
    %470 = vmatprep.subr.bf16.mxu0 0
    %471 = vmatpush2.bf16.msra.mxu0 0
    %472 = vmatprep.subr.bf16.mxu0 0
    %473 = vmatpush2.bf16.msra.mxu0 0
    %474 = vmatprep.subr.bf16.mxu0 0
    %475 = vmatpush2.bf16.msra.mxu0 0
    %476 = vmatprep.subr.bf16.mxu0 0
    %477 = vmatpush2.bf16.msra.mxu0 0
    %478 = vmatprep.subr.bf16.mxu0 0
    %479 = vmatpush2.bf16.msra.mxu0 0
    %480 = vmatprep.subr.bf16.mxu0 0
    %481 = vmatpush2.bf16.msra.mxu0 0
    %482 = vmatprep.subr.bf16.mxu0 0
    %483 = vmatpush2.bf16.msra.mxu0 0
    %484 = vmatprep.mubr.bf16.mxu0 0
    %485 = vmatmul.mubr.bf16.gmra.mxu0 %v450
    %v486 = vpop.f32.mrf.mxu0
    %v487 = vadd.f32 0.0, %v486
    %v488 = vpop.f32.mrf.mxu0
    %v489 = vpop.f32.mrf.mxu0
    %v490 = vpop.f32.mrf.mxu0
    %491 = vdwg.mxu0
    %v492 = vadd.f32 %v444, %v487
    %v493 = vxor.u32 %v492, 2147483648
    %v494 = vmul.f32 %v493, 1.442695
    %v495 = vpow.pop %v494
    %v496 = vadd.f32 %v495, 1.0
    %v497 = vrcp.pop %v496
    %v498 = vmul.f32 1.0, %v497
    %v499 = vtanh.pop %v492
    %v500 = vmul.f32 %v498, %v435
    %502 = vrot.lane.b32.xlu0 %v499, 64
    %v503 = vpop.permute.xlu0 %502
    %v505 = vmul.f32 %v498, %v503
    %507 = vrot.lane.b32.xlu0 %v505, 32
    %v508 = vpop.permute.xlu0 %507
    %v510 = vadd.f32 %v500, %v508
    %v511 = vtanh.pop %v510
    %513 = vrot.lane.b32.xlu0 %v511, 64
    %v514 = vpop.permute.xlu0 %513
    %v516 = vmul.f32 %v498, %v514
    %s517 = scalar_lea.vmem [#allocation4], 24
    %v518 = vld [vmem:[%s517] sm:$0xf]
    %v519 = vunpack.c.l.bf16 %v518
    %v520 = vpack.c.bf16 %v516, %v516
    %522 = vrot.lane.b32.xlu0 %v520, 32
    %v523 = vpop.permute.xlu0 %522
    %v525 = vsel %vm69, %v523, 0
    %527 = vmatprep.subr.bf16.mxu0 0
    %528 = vmatpush1.bf16.msra.mxu0 0
    %529 = vmatprep.subr.bf16.mxu0 0
    %530 = vmatpush1.bf16.msra.mxu0 0
    %531 = vmatprep.subr.bf16.mxu0 0
    %532 = vmatpush1.bf16.msra.mxu0 0
    %533 = vmatprep.subr.bf16.mxu0 0
    %534 = vmatpush1.bf16.msra.mxu0 0
    %535 = vmatprep.subr.bf16.mxu0 0
    %536 = vmatpush1.bf16.msra.mxu0 0
    %537 = vmatprep.subr.bf16.mxu0 0
    %538 = vmatpush1.bf16.msra.mxu0 0
    %539 = vmatprep.subr.bf16.mxu0 0
    %540 = vmatpush1.bf16.msra.mxu0 %v66
    %541 = vmatprep.subr.bf16.mxu0 0
    %542 = vmatpush1.bf16.msra.mxu0 %v65
    %543 = vmatprep.subr.bf16.mxu0 0
    %544 = vmatpush2.bf16.msra.mxu0 0
    %545 = vmatprep.subr.bf16.mxu0 0
    %546 = vmatpush2.bf16.msra.mxu0 0
    %547 = vmatprep.subr.bf16.mxu0 0
    %548 = vmatpush2.bf16.msra.mxu0 0
    %549 = vmatprep.subr.bf16.mxu0 0
    %550 = vmatpush2.bf16.msra.mxu0 0
    %551 = vmatprep.subr.bf16.mxu0 0
    %552 = vmatpush2.bf16.msra.mxu0 0
    %553 = vmatprep.subr.bf16.mxu0 0
    %554 = vmatpush2.bf16.msra.mxu0 0
    %555 = vmatprep.subr.bf16.mxu0 0
    %556 = vmatpush2.bf16.msra.mxu0 0
    %557 = vmatprep.subr.bf16.mxu0 0
    %558 = vmatpush2.bf16.msra.mxu0 0
    %559 = vmatprep.mubr.bf16.mxu0 0
    %560 = vmatmul.mubr.bf16.gmra.mxu0 %v525
    %v561 = vpop.f32.mrf.mxu0
    %v562 = vadd.f32 0.0, %v561
    %v563 = vpop.f32.mrf.mxu0
    %v564 = vpop.f32.mrf.mxu0
    %v565 = vpop.f32.mrf.mxu0
    %566 = vdwg.mxu0
    %v567 = vadd.f32 %v519, %v562
    %v568 = vxor.u32 %v567, 2147483648
    %v569 = vmul.f32 %v568, 1.442695
    %v570 = vpow.pop %v569
    %v571 = vadd.f32 %v570, 1.0
    %v572 = vrcp.pop %v571
    %v573 = vmul.f32 1.0, %v572
    %v574 = vtanh.pop %v567
    %v575 = vmul.f32 %v573, %v510
    %577 = vrot.lane.b32.xlu0 %v574, 64
    %v578 = vpop.permute.xlu0 %577
    %v580 = vmul.f32 %v573, %v578
    %582 = vrot.lane.b32.xlu0 %v580, 32
    %v583 = vpop.permute.xlu0 %582
    %v585 = vadd.f32 %v575, %v583
    %v586 = vtanh.pop %v585
    %588 = vrot.lane.b32.xlu0 %v586, 64
    %v589 = vpop.permute.xlu0 %588
    %v591 = vmul.f32 %v573, %v589
    %s592 = scalar_lea.vmem [#allocation4], 28
    %v593 = vld [vmem:[%s592] sm:$0xf]
    %v594 = vunpack.c.l.bf16 %v593
    %v595 = vpack.c.bf16 %v591, %v591
    %597 = vrot.lane.b32.xlu0 %v595, 32
    %v598 = vpop.permute.xlu0 %597
    %v600 = vsel %vm69, %v598, 0
    %602 = vmatprep.subr.bf16.mxu0 0
    %603 = vmatpush1.bf16.msra.mxu0 0
    %604 = vmatprep.subr.bf16.mxu0 0
    %605 = vmatpush1.bf16.msra.mxu0 0
    %606 = vmatprep.subr.bf16.mxu0 0
    %607 = vmatpush1.bf16.msra.mxu0 0
    %608 = vmatprep.subr.bf16.mxu0 0
    %609 = vmatpush1.bf16.msra.mxu0 0
    %610 = vmatprep.subr.bf16.mxu0 0
    %611 = vmatpush1.bf16.msra.mxu0 0
    %612 = vmatprep.subr.bf16.mxu0 0
    %613 = vmatpush1.bf16.msra.mxu0 0
    %614 = vmatprep.subr.bf16.mxu0 0
    %615 = vmatpush1.bf16.msra.mxu0 %v66
    %616 = vmatprep.subr.bf16.mxu0 0
    %617 = vmatpush1.bf16.msra.mxu0 %v65
    %618 = vmatprep.subr.bf16.mxu0 0
    %619 = vmatpush2.bf16.msra.mxu0 0
    %620 = vmatprep.subr.bf16.mxu0 0
    %621 = vmatpush2.bf16.msra.mxu0 0
    %622 = vmatprep.subr.bf16.mxu0 0
    %623 = vmatpush2.bf16.msra.mxu0 0
    %624 = vmatprep.subr.bf16.mxu0 0
    %625 = vmatpush2.bf16.msra.mxu0 0
    %626 = vmatprep.subr.bf16.mxu0 0
    %627 = vmatpush2.bf16.msra.mxu0 0
    %628 = vmatprep.subr.bf16.mxu0 0
    %629 = vmatpush2.bf16.msra.mxu0 0
    %630 = vmatprep.subr.bf16.mxu0 0
    %631 = vmatpush2.bf16.msra.mxu0 0
    %632 = vmatprep.subr.bf16.mxu0 0
    %633 = vmatpush2.bf16.msra.mxu0 0
    %634 = vmatprep.mubr.bf16.mxu0 0
    %635 = vmatmul.mubr.bf16.gmra.mxu0 %v600
    %v636 = vpop.f32.mrf.mxu0
    %v637 = vadd.f32 0.0, %v636
    %v638 = vpop.f32.mrf.mxu0
    %v639 = vpop.f32.mrf.mxu0
    %v640 = vpop.f32.mrf.mxu0
    %641 = vdwg.mxu0
    %v642 = vadd.f32 %v594, %v637
    %v643 = vxor.u32 %v642, 2147483648
    %v644 = vmul.f32 %v643, 1.442695
    %v645 = vpow.pop %v644
    %v646 = vadd.f32 %v645, 1.0
    %v647 = vrcp.pop %v646
    %v648 = vmul.f32 1.0, %v647
    %v649 = vtanh.pop %v642
    %v650 = vmul.f32 %v648, %v585
    %652 = vrot.lane.b32.xlu0 %v649, 64
    %v653 = vpop.permute.xlu0 %652
    %v655 = vmul.f32 %v648, %v653
    %657 = vrot.lane.b32.xlu0 %v655, 32
    %v658 = vpop.permute.xlu0 %657
    %v660 = vadd.f32 %v650, %v658
    %v661 = vtanh.pop %v660
    %663 = vrot.lane.b32.xlu0 %v661, 64
    %v664 = vpop.permute.xlu0 %663
    %v666 = vmul.f32 %v648, %v664
    %668 = vrot.lane.b32.xlu0 %v666, 32
    %v669 = vpop.permute.xlu0 %668
    %671 = vst.msk [vmem:[#allocation2] sm:$0xff] %vm69, %v669
    %673 = vrot.lane.b32.xlu0 %v660, 96
    %v674 = vpop.permute.xlu0 %673
    %676 = vst.msk [vmem:[#allocation3] sm:$0xff] %vm69, %v674
    // Predicated region
    $region22: #{tpu_custom_call.1} parent=1 // pred_check
      %p677 = pneg %p41
    $region23: #{tpu_custom_call.1} parent=1 // pred_check_branch
      %679 = sbr.rel (%p677) target = $region25
    $region24: #{tpu_custom_call.1} parent=1 // pred_region
      %680 = vst.msk [vmem:[#allocation9] sm:$0xff] %vm69, %v669
    $region25: #{tpu_custom_call.1} parent=1 // pred_fallthru
      _
    // Predicated region
    $region26: #{tpu_custom_call.1} parent=1 // pred_check
      _
    $region27: #{tpu_custom_call.1} parent=1 // pred_check_branch
      %682 = sbr.rel (0) target = $region29
    $region28: #{tpu_custom_call.1} parent=1 // pred_region
      %s684 = ssub.s32 128, 128
      %685 = vsyncadd [#allocation6], %s684
      %s687 = sshll.u32 [#allocation9], 4
      %s688 = int_to_ptr.vmem [resolvable:$true] %s687
      %690 = dma.vmem_to_hbm [thread:$0]  %s688, 128, %s2, [#allocation6]
    $region29: #{tpu_custom_call.1} parent=1 // pred_fallthru
      _
    // Predicated region
    $region30: #{tpu_custom_call.1} parent=1 // pred_check
      _
    $region31: #{tpu_custom_call.1} parent=1 // pred_check_branch
      %692 = sbr.rel (0) target = $region33
    $region32: #{tpu_custom_call.1} parent=1 // pred_region
      %693 = dma.done [#allocation6], 128
    $region33: #{tpu_custom_call.1} parent=1 // pred_fallthru
      _
    %694 = vsyncpa [#allocation5], 1
    %695 = vsyncpa [#allocation8], 1
    %696 = vsyncpa [#allocation6], 1

</llo_original>
